<compile_context>
chip_gen: v7x
topology: tpu7x:2x2x1
jax: 0.10.0
libtpu: 0.0.40
codegen_flags: <defaults>
</compile_context>

<pallas_src>
import jax
import jax.numpy as jnp
from jax.experimental import pallas as pl
from jax.experimental.pallas import tpu as pltpu


def _round_up(n, m):
    return ((n + m - 1) // m) * m


# ---------------------------------------------------------------------------
# Fused MLP kernel: all hidden layers + sigmoid head in one pallas_call.
# ---------------------------------------------------------------------------
def _make_fused_kernel(n_hidden):
    def kernel(x_ref, *refs):
        # refs = (w1, b1, ..., wN, bN, wout_row, bout, o_ref)
        o_ref = refs[-1]
        bout_ref = refs[-2]
        wout_ref = refs[-3]

        h = x_ref[...]                                   # (TM, D_in) f32
        for i in range(n_hidden):
            w_ref = refs[2 * i]                          # (K_pad, N_pad) bf16
            b_ref = refs[2 * i + 1]                      # (1, N_pad)  f32
            y = jnp.dot(h.astype(jnp.bfloat16), w_ref[...],
                        preferred_element_type=jnp.float32)
            h = jnp.maximum(y + b_ref[...], 0.0)         # f32 epilogue (v5e-safe)

        # N=1 head: VPU broadcast-mul + lane reduction (no 1-column MXU pass).
        z = jnp.sum(h * wout_ref[...], axis=-1, keepdims=True) + bout_ref[...]
        o_ref[...] = jax.nn.sigmoid(z)

    return kernel


def fused_mlp_forward(x, hidden_params, wout_row, bout):
    B, D = x.shape
    # Single full-batch block for small B; cap at 512 rows so 2-deep buffering
    # of the (TM, 256) activations stays tiny even on v7x's 64 MiB VMEM.
    TM = B if B <= 512 else 512
    grid = (pl.cdiv(B, TM),)

    in_specs = [pl.BlockSpec((TM, D), lambda i: (i, 0))]
    args = [x]
    for (w, b) in hidden_params:
        in_specs.append(pl.BlockSpec(w.shape, lambda i: (0, 0)))   # replicated
        in_specs.append(pl.BlockSpec(b.shape, lambda i: (0, 0)))
        args += [w, b]
    in_specs.append(pl.BlockSpec(wout_row.shape, lambda i: (0, 0)))
    in_specs.append(pl.BlockSpec(bout.shape, lambda i: (0, 0)))
    args += [wout_row, bout]

    return pl.pallas_call(
        _make_fused_kernel(len(hidden_params)),
        out_shape=jax.ShapeDtypeStruct((B, 1), jnp.float32),
        grid=grid,
        in_specs=in_specs,
        out_specs=pl.BlockSpec((TM, 1), lambda i: (i, 0)),
        compiler_params=pltpu.CompilerParams(
            dimension_semantics=("parallel",)),
    )(*args)


# ---------------------------------------------------------------------------
# CtrNetwork (parameters built deterministically in-script)
# ---------------------------------------------------------------------------
class CtrNetworkPallas:
    def __init__(self, cate_fea_nuniqs, input_dim, emb_size,
                 hid_dims=(256, 128, 64, 32),
                 dropout=(0.0, 0.0, 0.2, 0.2),
                 num_classes=1, key=None):
        del dropout  # nn.Dropout is the identity at inference
        # TODO(synk): padded-matmul head for num_classes > 1 (module default is 1).
        assert num_classes == 1
        self.input_dims = input_dim + len(cate_fea_nuniqs) * emb_size
        self.all_dims = [self.input_dims] + list(hid_dims)
        self.num_classes = num_classes

        if key is None:
            key = jax.random.PRNGKey(42)
        eps = 1e-5

        self.raw_layers = []      # (w, b, gamma, beta, rmean, rvar) f32 (reference)
        self.kernel_layers = []   # (w folded+padded bf16, b folded+padded f32)
        prev_dim = self.input_dims
        prev_pad = self.input_dims            # input feature dim left unpadded
        for i in range(1, len(self.all_dims)):
            fan_in, fan_out = self.all_dims[i - 1], self.all_dims[i]
            out_pad = _round_up(fan_out, 128)
            key, kw, kb, kg, kbe, km, kv = jax.random.split(key, 7)
            w = jax.random.normal(kw, (fan_in, fan_out), jnp.float32) * 0.05
            b = jax.random.normal(kb, (1, fan_out), jnp.float32) * 0.05
            gamma = 1.0 + 0.1 * jax.random.normal(kg, (1, fan_out), jnp.float32)
            beta = 0.1 * jax.random.normal(kbe, (1, fan_out), jnp.float32)
            rmean = 0.1 * jax.random.normal(km, (1, fan_out), jnp.float32)
            rvar = jnp.abs(1.0 + 0.1 * jax.random.normal(kv, (1, fan_out),
                                                         jnp.float32))
            self.raw_layers.append((w, b, gamma, beta, rmean, rvar))

            # Fold eval-mode BatchNorm1d into the Linear:
            #   (x@w + b)*scale + shift == x @ (w*scale) + (b*scale + shift)
            scale = gamma / jnp.sqrt(rvar + eps)
            shift = beta - rmean * scale
            w_fold = w * scale
            b_fold = b * scale + shift
            # Zero-pad to lane-aligned widths (padded columns stay exactly 0
            # after ReLU, so they never contribute downstream).
            w_pad = jnp.zeros((prev_pad, out_pad), jnp.float32)
            w_pad = w_pad.at[:fan_in, :fan_out].set(w_fold)
            b_pad = jnp.zeros((1, out_pad), jnp.float32)
            b_pad = b_pad.at[:, :fan_out].set(b_fold)
            self.kernel_layers.append((w_pad.astype(jnp.bfloat16), b_pad))
            prev_dim, prev_pad = fan_out, out_pad

        key, kw, kb = jax.random.split(key, 3)
        self.w_out_raw = jax.random.normal(
            kw, (prev_dim, num_classes), jnp.float32) * 0.05
        self.b_out_raw = jax.random.normal(
            kb, (1, num_classes), jnp.float32) * 0.05
        # Head stored as a broadcast row for the in-kernel VPU reduce.
        wrow = jnp.zeros((1, prev_pad), jnp.float32)
        self.wout_row = wrow.at[0, :prev_dim].set(self.w_out_raw[:, 0])
        self.bout = self.b_out_raw                      # (1, 1) f32

    def __call__(self, x_emb):
        return fused_mlp_forward(x_emb, self.kernel_layers,
                                 self.wout_row, self.bout)


# ---------------------------------------------------------------------------
# Pure-JAX references for verification
# ---------------------------------------------------------------------------
def reference_forward_f32(model, x):
    """Original module semantics in f32: Linear -> eval-BN -> ReLU -> Dropout(id)."""
    eps = 1e-5
    out = x
    for (w, b, gamma, beta, rmean, rvar) in model.raw_layers:
        y = out @ w + b
        y = (y - rmean) / jnp.sqrt(rvar + eps) * gamma + beta
        out = jnp.maximum(y, 0.0)
    return jax.nn.sigmoid(out @ model.w_out_raw + model.b_out_raw)


def reference_forward_bf16(model, x):
    """Same math as the Pallas kernel (bf16 weights, f32 accum) in plain JAX."""
    h = x
    for (w, b) in model.kernel_layers:
        y = jnp.dot(h.astype(jnp.bfloat16), w,
                    preferred_element_type=jnp.float32)
        h = jnp.maximum(y + b, 0.0)
    z = jnp.sum(h * model.wout_row, axis=-1, keepdims=True) + model.bout
    return jax.nn.sigmoid(z)


if __name__ == "__main__":
    # Small shapes consistent with the module:
    #   4 sparse features, emb_size=4, dense input_dim=16 -> input_dims=32
    cate_fea_nuniqs = [10, 20, 30, 40]
    input_dim = 16
    emb_size = 4
    batch = 8

    model = CtrNetworkPallas(cate_fea_nuniqs, input_dim, emb_size,
                             key=jax.random.PRNGKey(42))

    x = jax.random.normal(jax.random.PRNGKey(0),
                          (batch, model.input_dims), jnp.float32)

    out = jax.block_until_ready(model(x))

    ref_exact = reference_forward_bf16(model, x)   # kernel math, plain JAX
    ref_f32 = reference_forward_f32(model, x)      # original module semantics

    assert out.shape == (batch, 1), out.shape
    assert jnp.allclose(out, ref_exact, atol=2e-3, rtol=2e-3), \
        f"max err (bf16-matched ref) {jnp.max(jnp.abs(out - ref_exact))}"
    assert jnp.allclose(out, ref_f32, atol=3e-2, rtol=3e-2), \
        f"max err (f32 semantic ref) {jnp.max(jnp.abs(out - ref_f32))}"

    print("KERNEL_OK")
</pallas_src>

<mosaic_0001>
module attributes {stable_mosaic.version = 11 : i64} {
  func.func @kernel(%arg0: i32, %arg1: memref<8x32xf32, #tpu.memory_space<vmem>>, %arg2: memref<32x256xbf16, #tpu.memory_space<vmem>>, %arg3: memref<1x256xf32, #tpu.memory_space<vmem>>, %arg4: memref<256x128xbf16, #tpu.memory_space<vmem>>, %arg5: memref<1x128xf32, #tpu.memory_space<vmem>>, %arg6: memref<128x128xbf16, #tpu.memory_space<vmem>>, %arg7: memref<1x128xf32, #tpu.memory_space<vmem>>, %arg8: memref<128x128xbf16, #tpu.memory_space<vmem>>, %arg9: memref<1x128xf32, #tpu.memory_space<vmem>>, %arg10: memref<1x128xf32, #tpu.memory_space<vmem>>, %arg11: memref<1x1xf32, #tpu.memory_space<vmem>>, %arg12: memref<8x1xf32, #tpu.memory_space<vmem>>) attributes {dimension_semantics = [#tpu.dimension_semantics<parallel>], iteration_bounds = array<i64: 1>, scalar_prefetch = 0 : i64, scratch_operands = 0 : i64, tpu.core_type = #tpu.core_type<tc>, window_params = [{transform_indices = @transform_0, window_bounds = array<i64: 8, 32>}, {pipeline_mode = #tpu.pipeline_mode<synchronous>, transform_indices = @transform_1, window_bounds = array<i64: 32, 256>}, {pipeline_mode = #tpu.pipeline_mode<synchronous>, transform_indices = @transform_2, window_bounds = array<i64: 1, 256>}, {pipeline_mode = #tpu.pipeline_mode<synchronous>, transform_indices = @transform_3, window_bounds = array<i64: 256, 128>}, {pipeline_mode = #tpu.pipeline_mode<synchronous>, transform_indices = @transform_4, window_bounds = array<i64: 1, 128>}, {pipeline_mode = #tpu.pipeline_mode<synchronous>, transform_indices = @transform_5, window_bounds = array<i64: 128, 128>}, {pipeline_mode = #tpu.pipeline_mode<synchronous>, transform_indices = @transform_6, window_bounds = array<i64: 1, 128>}, {pipeline_mode = #tpu.pipeline_mode<synchronous>, transform_indices = @transform_7, window_bounds = array<i64: 128, 128>}, {pipeline_mode = #tpu.pipeline_mode<synchronous>, transform_indices = @transform_8, window_bounds = array<i64: 1, 128>}, {pipeline_mode = #tpu.pipeline_mode<synchronous>, transform_indices = @transform_9, window_bounds = array<i64: 1, 128>}, {pipeline_mode = #tpu.pipeline_mode<synchronous>, transform_indices = @transform_10, window_bounds = array<i64: 1, 1>}, {transform_indices = @transform_11, window_bounds = array<i64: 8, 1>}]} {
    %c0 = arith.constant 0 : index
    %c0_0 = arith.constant 0 : index
    %0 = vector.load %arg1[%c0, %c0_0] : memref<8x32xf32, #tpu.memory_space<vmem>>, vector<8x32xf32>
    %1 = arith.truncf %0 : vector<8x32xf32> to vector<8x32xbf16>
    %c0_1 = arith.constant 0 : index
    %c0_2 = arith.constant 0 : index
    %2 = vector.load %arg2[%c0_1, %c0_2] : memref<32x256xbf16, #tpu.memory_space<vmem>>, vector<32x256xbf16>
    %cst = arith.constant dense<0.000000e+00> : vector<8x256xf32>
    %3 = tpu.matmul %1, %2, %cst {dimension_numbers = #tpu.dot_dimension_numbers<[1], [0], [0], [1], [0, 0, 1, 1], [], []>} : vector<8x32xbf16>, vector<32x256xbf16>, vector<8x256xf32> -> vector<8x256xf32>
    %c0_3 = arith.constant 0 : index
    %c0_4 = arith.constant 0 : index
    %4 = vector.load %arg3[%c0_3, %c0_4] : memref<1x256xf32, #tpu.memory_space<vmem>>, vector<1x256xf32>
    %5 = vector.broadcast %4 : vector<1x256xf32> to vector<8x256xf32>
    %6 = arith.addf %3, %5 : vector<8x256xf32>
    %cst_5 = arith.constant 0.000000e+00 : f32
    %7 = vector.broadcast %cst_5 : f32 to vector<8x256xf32>
    %8 = arith.maximumf %6, %7 : vector<8x256xf32>
    %9 = arith.truncf %8 : vector<8x256xf32> to vector<8x256xbf16>
    %c0_6 = arith.constant 0 : index
    %c0_7 = arith.constant 0 : index
    %10 = vector.load %arg4[%c0_6, %c0_7] : memref<256x128xbf16, #tpu.memory_space<vmem>>, vector<256x128xbf16>
    %cst_8 = arith.constant dense<0.000000e+00> : vector<8x128xf32>
    %11 = tpu.matmul %9, %10, %cst_8 {dimension_numbers = #tpu.dot_dimension_numbers<[1], [0], [0], [1], [0, 0, 1, 1], [], []>} : vector<8x256xbf16>, vector<256x128xbf16>, vector<8x128xf32> -> vector<8x128xf32>
    %c0_9 = arith.constant 0 : index
    %c0_10 = arith.constant 0 : index
    %12 = vector.load %arg5[%c0_9, %c0_10] : memref<1x128xf32, #tpu.memory_space<vmem>>, vector<1x128xf32>
    %13 = vector.broadcast %12 : vector<1x128xf32> to vector<8x128xf32>
    %14 = arith.addf %11, %13 : vector<8x128xf32>
    %cst_11 = arith.constant 0.000000e+00 : f32
    %15 = vector.broadcast %cst_11 : f32 to vector<8x128xf32>
    %16 = arith.maximumf %14, %15 : vector<8x128xf32>
    %17 = arith.truncf %16 : vector<8x128xf32> to vector<8x128xbf16>
    %c0_12 = arith.constant 0 : index
    %c0_13 = arith.constant 0 : index
    %18 = vector.load %arg6[%c0_12, %c0_13] : memref<128x128xbf16, #tpu.memory_space<vmem>>, vector<128x128xbf16>
    %cst_14 = arith.constant dense<0.000000e+00> : vector<8x128xf32>
    %19 = tpu.matmul %17, %18, %cst_14 {dimension_numbers = #tpu.dot_dimension_numbers<[1], [0], [0], [1], [0, 0, 1, 1], [], []>} : vector<8x128xbf16>, vector<128x128xbf16>, vector<8x128xf32> -> vector<8x128xf32>
    %c0_15 = arith.constant 0 : index
    %c0_16 = arith.constant 0 : index
    %20 = vector.load %arg7[%c0_15, %c0_16] : memref<1x128xf32, #tpu.memory_space<vmem>>, vector<1x128xf32>
    %21 = vector.broadcast %20 : vector<1x128xf32> to vector<8x128xf32>
    %22 = arith.addf %19, %21 : vector<8x128xf32>
    %cst_17 = arith.constant 0.000000e+00 : f32
    %23 = vector.broadcast %cst_17 : f32 to vector<8x128xf32>
    %24 = arith.maximumf %22, %23 : vector<8x128xf32>
    %25 = arith.truncf %24 : vector<8x128xf32> to vector<8x128xbf16>
    %c0_18 = arith.constant 0 : index
    %c0_19 = arith.constant 0 : index
    %26 = vector.load %arg8[%c0_18, %c0_19] : memref<128x128xbf16, #tpu.memory_space<vmem>>, vector<128x128xbf16>
    %cst_20 = arith.constant dense<0.000000e+00> : vector<8x128xf32>
    %27 = tpu.matmul %25, %26, %cst_20 {dimension_numbers = #tpu.dot_dimension_numbers<[1], [0], [0], [1], [0, 0, 1, 1], [], []>} : vector<8x128xbf16>, vector<128x128xbf16>, vector<8x128xf32> -> vector<8x128xf32>
    %c0_21 = arith.constant 0 : index
    %c0_22 = arith.constant 0 : index
    %28 = vector.load %arg9[%c0_21, %c0_22] : memref<1x128xf32, #tpu.memory_space<vmem>>, vector<1x128xf32>
    %29 = vector.broadcast %28 : vector<1x128xf32> to vector<8x128xf32>
    %30 = arith.addf %27, %29 : vector<8x128xf32>
    %cst_23 = arith.constant 0.000000e+00 : f32
    %31 = vector.broadcast %cst_23 : f32 to vector<8x128xf32>
    %32 = arith.maximumf %30, %31 : vector<8x128xf32>
    %c0_24 = arith.constant 0 : index
    %c0_25 = arith.constant 0 : index
    %33 = vector.load %arg10[%c0_24, %c0_25] : memref<1x128xf32, #tpu.memory_space<vmem>>, vector<1x128xf32>
    %34 = vector.broadcast %33 : vector<1x128xf32> to vector<8x128xf32>
    %35 = arith.mulf %32, %34 : vector<8x128xf32>
    %cst_26 = arith.constant dense<0.000000e+00> : vector<8xf32>
    %36 = vector.multi_reduction <add>, %35, %cst_26 [1] : vector<8x128xf32> to vector<8xf32>
    %37 = vector.shape_cast %36 : vector<8xf32> to vector<8x1xf32>
    %c0_27 = arith.constant 0 : index
    %c0_28 = arith.constant 0 : index
    %38 = vector.load %arg11[%c0_27, %c0_28] : memref<1x1xf32, #tpu.memory_space<vmem>>, vector<1x1xf32>
    %39 = vector.broadcast %38 : vector<1x1xf32> to vector<8x1xf32>
    %40 = arith.addf %37, %39 : vector<8x1xf32>
    %41 = arith.negf %40 : vector<8x1xf32>
    %42 = math.exp %41 : vector<8x1xf32>
    %cst_29 = arith.constant 1.000000e+00 : f32
    %43 = vector.broadcast %cst_29 : f32 to vector<8x1xf32>
    %44 = arith.addf %43, %42 : vector<8x1xf32>
    %45 = arith.divf %43, %44 : vector<8x1xf32>
    %c0_30 = arith.constant 0 : index
    %c0_31 = arith.constant 0 : index
    %46 = vector.load %arg12[%c0_30, %c0_31] : memref<8x1xf32, #tpu.memory_space<vmem>>, vector<8x1xf32>
    tpu.vector_store %arg12[%c0_30, %c0_31], %45 {strides = array<i32>} : memref<8x1xf32, #tpu.memory_space<vmem>>, vector<8x1xf32>,
    return
  }
  func.func @transform_0(%arg0: i32) -> (i32, i32) {
    %c0_i32 = arith.constant 0 : i32
    %c0_i32_0 = arith.constant 0 : i32
    return %arg0, %c0_i32 : i32, i32
  }
  func.func @transform_1(%arg0: i32) -> (i32, i32) {
    %c0_i32 = arith.constant 0 : i32
    %c0_i32_0 = arith.constant 0 : i32
    %c0_i32_1 = arith.constant 0 : i32
    return %c0_i32, %c0_i32_0 : i32, i32
  }
  func.func @transform_2(%arg0: i32) -> (i32, i32) {
    %c0_i32 = arith.constant 0 : i32
    %c0_i32_0 = arith.constant 0 : i32
    %c0_i32_1 = arith.constant 0 : i32
    return %c0_i32, %c0_i32_0 : i32, i32
  }
  func.func @transform_3(%arg0: i32) -> (i32, i32) {
    %c0_i32 = arith.constant 0 : i32
    %c0_i32_0 = arith.constant 0 : i32
    %c0_i32_1 = arith.constant 0 : i32
    return %c0_i32, %c0_i32_0 : i32, i32
  }
  func.func @transform_4(%arg0: i32) -> (i32, i32) {
    %c0_i32 = arith.constant 0 : i32
    %c0_i32_0 = arith.constant 0 : i32
    %c0_i32_1 = arith.constant 0 : i32
    return %c0_i32, %c0_i32_0 : i32, i32
  }
  func.func @transform_5(%arg0: i32) -> (i32, i32) {
    %c0_i32 = arith.constant 0 : i32
    %c0_i32_0 = arith.constant 0 : i32
    %c0_i32_1 = arith.constant 0 : i32
    return %c0_i32, %c0_i32_0 : i32, i32
  }
  func.func @transform_6(%arg0: i32) -> (i32, i32) {
    %c0_i32 = arith.constant 0 : i32
    %c0_i32_0 = arith.constant 0 : i32
    %c0_i32_1 = arith.constant 0 : i32
    return %c0_i32, %c0_i32_0 : i32, i32
  }
  func.func @transform_7(%arg0: i32) -> (i32, i32) {
    %c0_i32 = arith.constant 0 : i32
    %c0_i32_0 = arith.constant 0 : i32
    %c0_i32_1 = arith.constant 0 : i32
    return %c0_i32, %c0_i32_0 : i32, i32
  }
  func.func @transform_8(%arg0: i32) -> (i32, i32) {
    %c0_i32 = arith.constant 0 : i32
    %c0_i32_0 = arith.constant 0 : i32
    %c0_i32_1 = arith.constant 0 : i32
    return %c0_i32, %c0_i32_0 : i32, i32
  }
  func.func @transform_9(%arg0: i32) -> (i32, i32) {
    %c0_i32 = arith.constant 0 : i32
    %c0_i32_0 = arith.constant 0 : i32
    %c0_i32_1 = arith.constant 0 : i32
    return %c0_i32, %c0_i32_0 : i32, i32
  }
  func.func @transform_10(%arg0: i32) -> (i32, i32) {
    %c0_i32 = arith.constant 0 : i32
    %c0_i32_0 = arith.constant 0 : i32
    %c0_i32_1 = arith.constant 0 : i32
    return %c0_i32, %c0_i32_0 : i32, i32
  }
  func.func @transform_11(%arg0: i32) -> (i32, i32) {
    %c0_i32 = arith.constant 0 : i32
    %c0_i32_0 = arith.constant 0 : i32
    return %arg0, %c0_i32 : i32, i32
  }
}

</mosaic_0001>

<llo_original>
// kernel: tpu_custom_call.1
$region0: #{tpu_custom_call.1}
  #allocation0 [shape = 'u32[]', space=smem, size = 0x4, offset = 0x4, fixed_abs, tag = 'smem constant byte address 0x4 - core index']
  #allocation1 [shape = 'u32[144,128]{1,0:T(1,128)}', space=vmem, size = 0x12000, scoped, tag = 'internal scratch']
  #allocation2 [shape = 'f32[1,1]{1,0:T(1,128)S(1)}', space=vmem, size = 0x200, scoped, tag = 'scoped memory for tpu_custom_call.1']
  %s0 = inlined_call_operand.hbm [shape: f32[8,32], index: 0, kind: input, shape index: {}]
  %s1 = inlined_call_operand.hbm [shape: bf16[32,256], index: 1, kind: input, shape index: {}]
  %s2 = inlined_call_operand.vmem [shape: f32[1,256], index: 2, kind: input, shape index: {}]
  %s3 = inlined_call_operand.hbm [shape: bf16[256,128], index: 3, kind: input, shape index: {}]
  %s4 = inlined_call_operand.vmem [shape: f32[1,128], index: 4, kind: input, shape index: {}]
  %s5 = inlined_call_operand.hbm [shape: bf16[128,128], index: 5, kind: input, shape index: {}]
  %s6 = inlined_call_operand.vmem [shape: f32[1,128], index: 6, kind: input, shape index: {}]
  %s7 = inlined_call_operand.hbm [shape: bf16[128,128], index: 7, kind: input, shape index: {}]
  %s8 = inlined_call_operand.vmem [shape: f32[1,128], index: 8, kind: input, shape index: {}]
  %s9 = inlined_call_operand.vmem [shape: f32[1,128], index: 9, kind: input, shape index: {}]
  %s10 = inlined_call_operand.<no memory space> [shape: f32[1,1], index: 10, kind: input, shape index: {}]
  %s11 = inlined_call_operand.vmem [shape: f32[8,1], index: 11, kind: output, shape index: {}]
  %s12 = sld [smem:[#allocation0]]
  $region74: #{tpu_custom_call.1} parent=0
    _
  %s14 = ssub.s32 1, %s12
  %s15 = scalar_select 0, %s14, %s12
  %v16 = vstv %s10
  %17 = vst [vmem:[#allocation2] sm:$0x1] %v16
  $region1: #{tpu_custom_call.1} parent=0
    #allocation3 [shape = 'u8[4096]{0}', space=vmem, size = 0x1000, scoped, tag = 'input window, operand 0, single buffered']
    #allocation4 [shape = 's32[1]{0}', space=sflag, size = 0x4, scoped, tag = 'scoped memory for tpu_custom_call.1']
    #allocation5 [shape = 'u8[16384]{0}', space=vmem, size = 0x4000, scoped, tag = 'input window, operand 1, single buffered']
    #allocation6 [shape = 's32[1]{0}', space=sflag, size = 0x4, scoped, tag = 'scoped memory for tpu_custom_call.1']
    #allocation7 [shape = 'u8[65536]{0}', space=vmem, size = 0x10000, scoped, tag = 'input window, operand 3, single buffered']
    #allocation8 [shape = 'u8[32768]{0}', space=vmem, size = 0x8000, scoped, tag = 'input window, operand 5, single buffered']
    #allocation9 [shape = 's32[1]{0}', space=sflag, size = 0x4, scoped, tag = 'scoped memory for tpu_custom_call.1']
    #allocation10 [shape = 'u8[32768]{0}', space=vmem, size = 0x8000, scoped, tag = 'input window, operand 7, single buffered']
    %18 = vsyncpa [#allocation4], 0
    %19 = vsyncpa [#allocation6], 0
    %20 = vsyncpa [#allocation9], 0
    // Predicated region
    $region2: #{tpu_custom_call.1} parent=1 // pred_check
      _
    $region3: #{tpu_custom_call.1} parent=1 // pred_check_branch
      %22 = sbr.rel (0) target = $region5
    $region4: #{tpu_custom_call.1} parent=1 // pred_region
      %s24 = ssub.s32 128, 128
      %25 = vsyncadd [#allocation4], %s24
      %s27 = sshll.u32 [#allocation3], 4
      %s28 = int_to_ptr.vmem [resolvable:$true] %s27
      %30 = dma.hbm_to_vmem [thread:$0]  %s0, 128, %s28, [#allocation4]
    $region5: #{tpu_custom_call.1} parent=1 // pred_fallthru
      _
    // Predicated region
    $region6: #{tpu_custom_call.1} parent=1 // pred_check
      _
    $region7: #{tpu_custom_call.1} parent=1 // pred_check_branch
      %32 = sbr.rel (0) target = $region9
    $region8: #{tpu_custom_call.1} parent=1 // pred_region
      %s34 = ssub.s32 512, 512
      %35 = vsyncadd [#allocation6], %s34
      %s36 = sshll.u32 [#allocation5], 4
      %s37 = int_to_ptr.vmem [resolvable:$true] %s36
      %42 = dma.hbm_to_vmem [thread:$0]  %s1, 512, %s37, [#allocation6], 128, 128, 8
    $region9: #{tpu_custom_call.1} parent=1 // pred_fallthru
      _
    // Predicated region
    $region10: #{tpu_custom_call.1} parent=1 // pred_check
      _
    $region11: #{tpu_custom_call.1} parent=1 // pred_check_branch
      %44 = sbr.rel (0) target = $region13
    $region12: #{tpu_custom_call.1} parent=1 // pred_region
      _
    $region13: #{tpu_custom_call.1} parent=1 // pred_fallthru
      _
    // Predicated region
    $region14: #{tpu_custom_call.1} parent=1 // pred_check
      _
    $region15: #{tpu_custom_call.1} parent=1 // pred_check_branch
      %46 = sbr.rel (0) target = $region17
    $region16: #{tpu_custom_call.1} parent=1 // pred_region
      %s48 = ssub.s32 2048, 2048
      %49 = vsyncadd [#allocation6], %s48
      %s50 = sshll.u32 [#allocation7], 4
      %s51 = int_to_ptr.vmem [resolvable:$true] %s50
      %56 = dma.hbm_to_vmem [thread:$0]  %s3, 2048, %s51, [#allocation6], 64, 64, 4
    $region17: #{tpu_custom_call.1} parent=1 // pred_fallthru
      _
    // Predicated region
    $region18: #{tpu_custom_call.1} parent=1 // pred_check
      _
    $region19: #{tpu_custom_call.1} parent=1 // pred_check_branch
      %58 = sbr.rel (0) target = $region21
    $region20: #{tpu_custom_call.1} parent=1 // pred_region
      _
    $region21: #{tpu_custom_call.1} parent=1 // pred_fallthru
      _
    // Predicated region
    $region22: #{tpu_custom_call.1} parent=1 // pred_check
      _
    $region23: #{tpu_custom_call.1} parent=1 // pred_check_branch
      %60 = sbr.rel (0) target = $region25
    $region24: #{tpu_custom_call.1} parent=1 // pred_region
      %s62 = ssub.s32 1024, 1024
      %63 = vsyncadd [#allocation9], %s62
      %s64 = sshll.u32 [#allocation8], 4
      %s65 = int_to_ptr.vmem [resolvable:$true] %s64
      %70 = dma.hbm_to_vmem [thread:$0]  %s5, 1024, %s65, [#allocation9], 64, 64, 4
    $region25: #{tpu_custom_call.1} parent=1 // pred_fallthru
      _
    // Predicated region
    $region26: #{tpu_custom_call.1} parent=1 // pred_check
      _
    $region27: #{tpu_custom_call.1} parent=1 // pred_check_branch
      %72 = sbr.rel (0) target = $region29
    $region28: #{tpu_custom_call.1} parent=1 // pred_region
      _
    $region29: #{tpu_custom_call.1} parent=1 // pred_fallthru
      _
    // Predicated region
    $region30: #{tpu_custom_call.1} parent=1 // pred_check
      _
    $region31: #{tpu_custom_call.1} parent=1 // pred_check_branch
      %74 = sbr.rel (0) target = $region33
    $region32: #{tpu_custom_call.1} parent=1 // pred_region
      %s76 = ssub.s32 1024, 1024
      %77 = vsyncadd [#allocation9], %s76
      %s78 = sshll.u32 [#allocation10], 4
      %s79 = int_to_ptr.vmem [resolvable:$true] %s78
      %84 = dma.hbm_to_vmem [thread:$0]  %s7, 1024, %s79, [#allocation9], 64, 64, 4
    $region33: #{tpu_custom_call.1} parent=1 // pred_fallthru
      _
    // Predicated region
    $region34: #{tpu_custom_call.1} parent=1 // pred_check
      _
    $region35: #{tpu_custom_call.1} parent=1 // pred_check_branch
      %86 = sbr.rel (0) target = $region37
    $region36: #{tpu_custom_call.1} parent=1 // pred_region
      _
    $region37: #{tpu_custom_call.1} parent=1 // pred_fallthru
      _
    // Predicated region
    $region38: #{tpu_custom_call.1} parent=1 // pred_check
      _
    $region39: #{tpu_custom_call.1} parent=1 // pred_check_branch
      %88 = sbr.rel (0) target = $region41
    $region40: #{tpu_custom_call.1} parent=1 // pred_region
      _
    $region41: #{tpu_custom_call.1} parent=1 // pred_fallthru
      _
    // Predicated region
    $region42: #{tpu_custom_call.1} parent=1 // pred_check
      _
    $region43: #{tpu_custom_call.1} parent=1 // pred_check_branch
      %90 = sbr.rel (0) target = $region45
    $region44: #{tpu_custom_call.1} parent=1 // pred_region
      _
    $region45: #{tpu_custom_call.1} parent=1 // pred_fallthru
      _
    // Predicated region
    $region46: #{tpu_custom_call.1} parent=1 // pred_check
      _
    $region47: #{tpu_custom_call.1} parent=1 // pred_check_branch
      %92 = sbr.rel (0) target = $region49
    $region48: #{tpu_custom_call.1} parent=1 // pred_region
      %93 = dma.done [#allocation4], 128
    $region49: #{tpu_custom_call.1} parent=1 // pred_fallthru
      _
    // Predicated region
    $region50: #{tpu_custom_call.1} parent=1 // pred_check
      _
    $region51: #{tpu_custom_call.1} parent=1 // pred_check_branch
      %95 = sbr.rel (0) target = $region53
    $region52: #{tpu_custom_call.1} parent=1 // pred_region
      %96 = dma.done [#allocation6], 512
    $region53: #{tpu_custom_call.1} parent=1 // pred_fallthru
      _
    // Predicated region
    $region54: #{tpu_custom_call.1} parent=1 // pred_check
      _
    $region55: #{tpu_custom_call.1} parent=1 // pred_check_branch
      %98 = sbr.rel (0) target = $region57
    $region56: #{tpu_custom_call.1} parent=1 // pred_region
      %99 = dma.done [#allocation6], 2048
    $region57: #{tpu_custom_call.1} parent=1 // pred_fallthru
      _
    // Predicated region
    $region58: #{tpu_custom_call.1} parent=1 // pred_check
      _
    $region59: #{tpu_custom_call.1} parent=1 // pred_check_branch
      %101 = sbr.rel (0) target = $region61
    $region60: #{tpu_custom_call.1} parent=1 // pred_region
      %102 = dma.done [#allocation9], 1024
    $region61: #{tpu_custom_call.1} parent=1 // pred_fallthru
      _
    // Predicated region
    $region62: #{tpu_custom_call.1} parent=1 // pred_check
      _
    $region63: #{tpu_custom_call.1} parent=1 // pred_check_branch
      %104 = sbr.rel (0) target = $region65
    $region64: #{tpu_custom_call.1} parent=1 // pred_region
      %105 = dma.done [#allocation9], 1024
    $region65: #{tpu_custom_call.1} parent=1 // pred_fallthru
      _
    %v107 = vld [vmem:[#allocation3] sm:$0xff]
    %v108 = vpack.c.bf16 %v107, %v107
    %v109 = vld [vmem:[#allocation5] sm:$0xff]
    %v110 = vld [vmem:[#allocation5 + $0x8] sm:$0xff]
    %v111 = vld [vmem:[#allocation5 + $0x10] sm:$0xff]
    %v112 = vld [vmem:[#allocation5 + $0x18] sm:$0xff]
    %v113 = vld [vmem:[%s2] sm:$0x3]
    %v115 = vlaneseq
    %v116 = vshrl.u32 %v115, 7
    %v117 = vsub.s32 0, %v116
    %v118 = vrot.slane %v113, %v117
    %v119 = vlaneseq
    %v120 = vshrl.u32 %v119, 7
    %v121 = vsub.s32 1, %v120
    %v122 = vrot.slane %v113, %v121
    %v129 = vunpack.c.l.b16 %v109
    %v130 = vunpack.c.h.b16 %v109
    %v131 = vunpack.c.l.b16 %v110
    %v132 = vunpack.c.h.b16 %v110
    %v133 = vunpack.c.l.b16 %v111
    %v134 = vunpack.c.h.b16 %v111
    %v135 = vunpack.c.l.b16 %v112
    %v136 = vunpack.c.h.b16 %v112
    %v137 = vpack.c.b16 %v131, %v129
    %v138 = vpack.c.b16 %v132, %v130
    %v139 = vpack.c.b16 %v135, %v133
    %v140 = vpack.c.b16 %v136, %v134
    %vm145 = vcmask 261120
    %v147 = vsel %vm145, %v108, 0
    %149 = vmatprep.subr.bf16.mxu0 %v138
    %150 = vmatpush1.bf16.msra.mxu0 %v137
    %151 = vmatprep.subr.bf16.mxu0 %v140
    %152 = vmatpush1.bf16.msra.mxu0 %v139
    %153 = vmatprep.subr.bf16.mxu0 0
    %154 = vmatpush1.bf16.msra.mxu0 0
    %155 = vmatprep.subr.bf16.mxu0 0
    %156 = vmatpush1.bf16.msra.mxu0 0
    %157 = vmatprep.subr.bf16.mxu0 0
    %158 = vmatpush1.bf16.msra.mxu0 0
    %159 = vmatprep.subr.bf16.mxu0 0
    %160 = vmatpush1.bf16.msra.mxu0 0
    %161 = vmatprep.subr.bf16.mxu0 0
    %162 = vmatpush1.bf16.msra.mxu0 0
    %163 = vmatprep.subr.bf16.mxu0 0
    %164 = vmatpush1.bf16.msra.mxu0 0
    %165 = vmatprep.subr.bf16.mxu0 0
    %166 = vmatpush1.bf16.msra.mxu0 0
    %167 = vmatprep.subr.bf16.mxu0 0
    %168 = vmatpush1.bf16.msra.mxu0 0
    %169 = vmatprep.subr.bf16.mxu0 0
    %170 = vmatpush1.bf16.msra.mxu0 0
    %171 = vmatprep.subr.bf16.mxu0 0
    %172 = vmatpush1.bf16.msra.mxu0 0
    %173 = vmatprep.subr.bf16.mxu0 0
    %174 = vmatpush1.bf16.msra.mxu0 0
    %175 = vmatprep.subr.bf16.mxu0 0
    %176 = vmatpush1.bf16.msra.mxu0 0
    %177 = vmatprep.subr.bf16.mxu0 0
    %178 = vmatpush1.bf16.msra.mxu0 0
    %179 = vmatprep.subr.bf16.mxu0 0
    %180 = vmatpush1.bf16.msra.mxu0 0
    %181 = vmatprep.mubr.bf16.mxu0 0
    %182 = vmatmul.mubr.bf16.gmra.mrb[0].mxu0 %v147
    %v183 = vpop.f32.mrb[0].mxu0
    %v184 = vadd.f32 %v118, %v183
    %v185 = vpop.f32.mrb[0].mxu0
    %v186 = vadd.f32 %v122, %v185
    %v187 = vpop.f32.mrb[0].mxu0
    %v188 = vpop.f32.mrb[0].mxu0
    %189 = vdwg.mxu0
    %v190 = vmax.f32 %v184, 0.0
    %v191 = vmax.f32 %v186, 0.0
    %v192 = vpack.c.bf16 %v190, %v190
    %v193 = vpack.c.bf16 %v191, %v191
    %v194 = vld [vmem:[#allocation7] sm:$0xf]
    %v195 = vld [vmem:[#allocation7 + $0x4] sm:$0xf]
    %v196 = vld [vmem:[#allocation7 + $0x8] sm:$0xf]
    %v197 = vld [vmem:[#allocation7 + $0xc] sm:$0xf]
    %v198 = vld [vmem:[#allocation7 + $0x10] sm:$0xf]
    %v199 = vld [vmem:[#allocation7 + $0x14] sm:$0xf]
    %v200 = vld [vmem:[#allocation7 + $0x18] sm:$0xf]
    %v201 = vld [vmem:[#allocation7 + $0x1c] sm:$0xf]
    %v202 = vld [vmem:[#allocation7 + $0x20] sm:$0xf]
    %v203 = vld [vmem:[#allocation7 + $0x24] sm:$0xf]
    %v204 = vld [vmem:[#allocation7 + $0x28] sm:$0xf]
    %v205 = vld [vmem:[#allocation7 + $0x2c] sm:$0xf]
    %v206 = vld [vmem:[#allocation7 + $0x30] sm:$0xf]
    %v207 = vld [vmem:[#allocation7 + $0x34] sm:$0xf]
    %v208 = vld [vmem:[#allocation7 + $0x38] sm:$0xf]
    %v209 = vld [vmem:[#allocation7 + $0x3c] sm:$0xf]
    %v210 = vld [vmem:[#allocation7 + $0x40] sm:$0xf]
    %v211 = vld [vmem:[#allocation7 + $0x44] sm:$0xf]
    %v212 = vld [vmem:[#allocation7 + $0x48] sm:$0xf]
    %v213 = vld [vmem:[#allocation7 + $0x4c] sm:$0xf]
    %v214 = vld [vmem:[#allocation7 + $0x50] sm:$0xf]
    %v215 = vld [vmem:[#allocation7 + $0x54] sm:$0xf]
    %v216 = vld [vmem:[#allocation7 + $0x58] sm:$0xf]
    %v217 = vld [vmem:[#allocation7 + $0x5c] sm:$0xf]
    %v218 = vld [vmem:[#allocation7 + $0x60] sm:$0xf]
    %v219 = vld [vmem:[#allocation7 + $0x64] sm:$0xf]
    %v220 = vld [vmem:[#allocation7 + $0x68] sm:$0xf]
    %v221 = vld [vmem:[#allocation7 + $0x6c] sm:$0xf]
    %v222 = vld [vmem:[#allocation7 + $0x70] sm:$0xf]
    %v223 = vld [vmem:[#allocation7 + $0x74] sm:$0xf]
    %v224 = vld [vmem:[#allocation7 + $0x78] sm:$0xf]
    %v225 = vld [vmem:[#allocation7 + $0x7c] sm:$0xf]
    %v226 = vld [vmem:[%s4] sm:$0x1]
    %v228 = vlaneseq
    %v229 = vshrl.u32 %v228, 7
    %v230 = vsub.s32 0, %v229
    %v231 = vrot.slane %v226, %v230
    %v265 = vunpack.c.l.b16 %v194
    %v266 = vunpack.c.l.b16 %v195
    %v267 = vunpack.c.l.b16 %v196
    %v268 = vunpack.c.l.b16 %v197
    %v269 = vunpack.c.l.b16 %v198
    %v270 = vunpack.c.l.b16 %v199
    %v271 = vunpack.c.l.b16 %v200
    %v272 = vunpack.c.l.b16 %v201
    %v273 = vunpack.c.l.b16 %v202
    %v274 = vunpack.c.l.b16 %v203
    %v275 = vunpack.c.l.b16 %v204
    %v276 = vunpack.c.l.b16 %v205
    %v277 = vunpack.c.l.b16 %v206
    %v278 = vunpack.c.l.b16 %v207
    %v279 = vunpack.c.l.b16 %v208
    %v280 = vunpack.c.l.b16 %v209
    %v281 = vunpack.c.l.b16 %v210
    %v282 = vunpack.c.l.b16 %v211
    %v283 = vunpack.c.l.b16 %v212
    %v284 = vunpack.c.l.b16 %v213
    %v285 = vunpack.c.l.b16 %v214
    %v286 = vunpack.c.l.b16 %v215
    %v287 = vunpack.c.l.b16 %v216
    %v288 = vunpack.c.l.b16 %v217
    %v289 = vunpack.c.l.b16 %v218
    %v290 = vunpack.c.l.b16 %v219
    %v291 = vunpack.c.l.b16 %v220
    %v292 = vunpack.c.l.b16 %v221
    %v293 = vunpack.c.l.b16 %v222
    %v294 = vunpack.c.l.b16 %v223
    %v295 = vunpack.c.l.b16 %v224
    %v296 = vunpack.c.l.b16 %v225
    %v297 = vpack.c.b16 %v266, %v265
    %v298 = vpack.c.b16 %v268, %v267
    %v299 = vpack.c.b16 %v270, %v269
    %v300 = vpack.c.b16 %v272, %v271
    %v301 = vpack.c.b16 %v274, %v273
    %v302 = vpack.c.b16 %v276, %v275
    %v303 = vpack.c.b16 %v278, %v277
    %v304 = vpack.c.b16 %v280, %v279
    %v305 = vpack.c.b16 %v282, %v281
    %v306 = vpack.c.b16 %v284, %v283
    %v307 = vpack.c.b16 %v286, %v285
    %v308 = vpack.c.b16 %v288, %v287
    %v309 = vpack.c.b16 %v290, %v289
    %v310 = vpack.c.b16 %v292, %v291
    %v311 = vpack.c.b16 %v294, %v293
    %v312 = vpack.c.b16 %v296, %v295
    %329 = vmatprep.subr.bf16.mxu0 0
    %330 = vmatpush1.bf16.msra.mxu0 %v297
    %331 = vmatprep.subr.bf16.mxu0 0
    %332 = vmatpush1.bf16.msra.mxu0 %v298
    %333 = vmatprep.subr.bf16.mxu0 0
    %334 = vmatpush1.bf16.msra.mxu0 %v299
    %335 = vmatprep.subr.bf16.mxu0 0
    %336 = vmatpush1.bf16.msra.mxu0 %v300
    %337 = vmatprep.subr.bf16.mxu0 0
    %338 = vmatpush1.bf16.msra.mxu0 %v301
    %339 = vmatprep.subr.bf16.mxu0 0
    %340 = vmatpush1.bf16.msra.mxu0 %v302
    %341 = vmatprep.subr.bf16.mxu0 0
    %342 = vmatpush1.bf16.msra.mxu0 %v303
    %343 = vmatprep.subr.bf16.mxu0 0
    %344 = vmatpush1.bf16.msra.mxu0 %v304
    %345 = vmatprep.subr.bf16.mxu0 0
    %346 = vmatpush1.bf16.msra.mxu0 %v305
    %347 = vmatprep.subr.bf16.mxu0 0
    %348 = vmatpush1.bf16.msra.mxu0 %v306
    %349 = vmatprep.subr.bf16.mxu0 0
    %350 = vmatpush1.bf16.msra.mxu0 %v307
    %351 = vmatprep.subr.bf16.mxu0 0
    %352 = vmatpush1.bf16.msra.mxu0 %v308
    %353 = vmatprep.subr.bf16.mxu0 0
    %354 = vmatpush1.bf16.msra.mxu0 %v309
    %355 = vmatprep.subr.bf16.mxu0 0
    %356 = vmatpush1.bf16.msra.mxu0 %v310
    %357 = vmatprep.subr.bf16.mxu0 0
    %358 = vmatpush1.bf16.msra.mxu0 %v311
    %359 = vmatprep.subr.bf16.mxu0 0
    %360 = vmatpush1.bf16.msra.mxu0 %v312
    %361 = vmatprep.mubr.bf16.mxu0 %v193
    %362 = vmatmul.mubr.bf16.gmra.mrb[0].mxu0 %v192
    %v363 = vpop.f32.mrb[0].mxu0
    %v364 = vadd.f32 %v231, %v363
    %v365 = vpop.f32.mrb[0].mxu0
    %v366 = vpop.f32.mrb[0].mxu0
    %v367 = vpop.f32.mrb[0].mxu0
    %368 = vdwg.mxu0
    %v369 = vmax.f32 %v364, 0.0
    %v370 = vpack.c.bf16 %v369, %v369
    %v371 = vld [vmem:[#allocation8] sm:$0xf]
    %v372 = vld [vmem:[#allocation8 + $0x4] sm:$0xf]
    %v373 = vld [vmem:[#allocation8 + $0x8] sm:$0xf]
    %v374 = vld [vmem:[#allocation8 + $0xc] sm:$0xf]
    %v375 = vld [vmem:[#allocation8 + $0x10] sm:$0xf]
    %v376 = vld [vmem:[#allocation8 + $0x14] sm:$0xf]
    %v377 = vld [vmem:[#allocation8 + $0x18] sm:$0xf]
    %v378 = vld [vmem:[#allocation8 + $0x1c] sm:$0xf]
    %v379 = vld [vmem:[#allocation8 + $0x20] sm:$0xf]
    %v380 = vld [vmem:[#allocation8 + $0x24] sm:$0xf]
    %v381 = vld [vmem:[#allocation8 + $0x28] sm:$0xf]
    %v382 = vld [vmem:[#allocation8 + $0x2c] sm:$0xf]
    %v383 = vld [vmem:[#allocation8 + $0x30] sm:$0xf]
    %v384 = vld [vmem:[#allocation8 + $0x34] sm:$0xf]
    %v385 = vld [vmem:[#allocation8 + $0x38] sm:$0xf]
    %v386 = vld [vmem:[#allocation8 + $0x3c] sm:$0xf]
    %v387 = vld [vmem:[%s6] sm:$0x1]
    %v389 = vlaneseq
    %v390 = vshrl.u32 %v389, 7
    %v391 = vsub.s32 0, %v390
    %v392 = vrot.slane %v387, %v391
    %v410 = vunpack.c.l.b16 %v371
    %v411 = vunpack.c.l.b16 %v372
    %v412 = vunpack.c.l.b16 %v373
    %v413 = vunpack.c.l.b16 %v374
    %v414 = vunpack.c.l.b16 %v375
    %v415 = vunpack.c.l.b16 %v376
    %v416 = vunpack.c.l.b16 %v377
    %v417 = vunpack.c.l.b16 %v378
    %v418 = vunpack.c.l.b16 %v379
    %v419 = vunpack.c.l.b16 %v380
    %v420 = vunpack.c.l.b16 %v381
    %v421 = vunpack.c.l.b16 %v382
    %v422 = vunpack.c.l.b16 %v383
    %v423 = vunpack.c.l.b16 %v384
    %v424 = vunpack.c.l.b16 %v385
    %v425 = vunpack.c.l.b16 %v386
    %v426 = vpack.c.b16 %v411, %v410
    %v427 = vpack.c.b16 %v413, %v412
    %v428 = vpack.c.b16 %v415, %v414
    %v429 = vpack.c.b16 %v417, %v416
    %v430 = vpack.c.b16 %v419, %v418
    %v431 = vpack.c.b16 %v421, %v420
    %v432 = vpack.c.b16 %v423, %v422
    %v433 = vpack.c.b16 %v425, %v424
    %442 = vmatprep.subr.bf16.mxu0 0
    %443 = vmatpush1.bf16.msra.mxu0 %v426
    %444 = vmatprep.subr.bf16.mxu0 0
    %445 = vmatpush1.bf16.msra.mxu0 %v427
    %446 = vmatprep.subr.bf16.mxu0 0
    %447 = vmatpush1.bf16.msra.mxu0 %v428
    %448 = vmatprep.subr.bf16.mxu0 0
    %449 = vmatpush1.bf16.msra.mxu0 %v429
    %450 = vmatprep.subr.bf16.mxu0 0
    %451 = vmatpush1.bf16.msra.mxu0 %v430
    %452 = vmatprep.subr.bf16.mxu0 0
    %453 = vmatpush1.bf16.msra.mxu0 %v431
    %454 = vmatprep.subr.bf16.mxu0 0
    %455 = vmatpush1.bf16.msra.mxu0 %v432
    %456 = vmatprep.subr.bf16.mxu0 0
    %457 = vmatpush1.bf16.msra.mxu0 %v433
    %458 = vmatprep.subr.bf16.mxu0 0
    %459 = vmatpush1.bf16.msra.mxu0 0
    %460 = vmatprep.subr.bf16.mxu0 0
    %461 = vmatpush1.bf16.msra.mxu0 0
    %462 = vmatprep.subr.bf16.mxu0 0
    %463 = vmatpush1.bf16.msra.mxu0 0
    %464 = vmatprep.subr.bf16.mxu0 0
    %465 = vmatpush1.bf16.msra.mxu0 0
    %466 = vmatprep.subr.bf16.mxu0 0
    %467 = vmatpush1.bf16.msra.mxu0 0
    %468 = vmatprep.subr.bf16.mxu0 0
    %469 = vmatpush1.bf16.msra.mxu0 0
    %470 = vmatprep.subr.bf16.mxu0 0
    %471 = vmatpush1.bf16.msra.mxu0 0
    %472 = vmatprep.subr.bf16.mxu0 0
    %473 = vmatpush1.bf16.msra.mxu0 0
    %474 = vmatprep.mubr.bf16.mxu0 0
    %475 = vmatmul.mubr.bf16.gmra.mrb[0].mxu0 %v370
    %v476 = vpop.f32.mrb[0].mxu0
    %v477 = vadd.f32 %v392, %v476
    %v478 = vpop.f32.mrb[0].mxu0
    %v479 = vpop.f32.mrb[0].mxu0
    %v480 = vpop.f32.mrb[0].mxu0
    %481 = vdwg.mxu0
    %v482 = vmax.f32 %v477, 0.0
    %v483 = vpack.c.bf16 %v482, %v482
    %v484 = vld [vmem:[#allocation10] sm:$0xf]
    %v485 = vld [vmem:[#allocation10 + $0x4] sm:$0xf]
    %v486 = vld [vmem:[#allocation10 + $0x8] sm:$0xf]
    %v487 = vld [vmem:[#allocation10 + $0xc] sm:$0xf]
    %v488 = vld [vmem:[#allocation10 + $0x10] sm:$0xf]
    %v489 = vld [vmem:[#allocation10 + $0x14] sm:$0xf]
    %v490 = vld [vmem:[#allocation10 + $0x18] sm:$0xf]
    %v491 = vld [vmem:[#allocation10 + $0x1c] sm:$0xf]
    %v492 = vld [vmem:[#allocation10 + $0x20] sm:$0xf]
    %v493 = vld [vmem:[#allocation10 + $0x24] sm:$0xf]
    %v494 = vld [vmem:[#allocation10 + $0x28] sm:$0xf]
    %v495 = vld [vmem:[#allocation10 + $0x2c] sm:$0xf]
    %v496 = vld [vmem:[#allocation10 + $0x30] sm:$0xf]
    %v497 = vld [vmem:[#allocation10 + $0x34] sm:$0xf]
    %v498 = vld [vmem:[#allocation10 + $0x38] sm:$0xf]
    %v499 = vld [vmem:[#allocation10 + $0x3c] sm:$0xf]
    %v500 = vld [vmem:[%s8] sm:$0x1]
    %v502 = vlaneseq
    %v503 = vshrl.u32 %v502, 7
    %v504 = vsub.s32 0, %v503
    %v505 = vrot.slane %v500, %v504
    %v523 = vunpack.c.l.b16 %v484
    %v524 = vunpack.c.l.b16 %v485
    %v525 = vunpack.c.l.b16 %v486
    %v526 = vunpack.c.l.b16 %v487
    %v527 = vunpack.c.l.b16 %v488
    %v528 = vunpack.c.l.b16 %v489
    %v529 = vunpack.c.l.b16 %v490
    %v530 = vunpack.c.l.b16 %v491
    %v531 = vunpack.c.l.b16 %v492
    %v532 = vunpack.c.l.b16 %v493
    %v533 = vunpack.c.l.b16 %v494
    %v534 = vunpack.c.l.b16 %v495
    %v535 = vunpack.c.l.b16 %v496
    %v536 = vunpack.c.l.b16 %v497
    %v537 = vunpack.c.l.b16 %v498
    %v538 = vunpack.c.l.b16 %v499
    %v539 = vpack.c.b16 %v524, %v523
    %v540 = vpack.c.b16 %v526, %v525
    %v541 = vpack.c.b16 %v528, %v527
    %v542 = vpack.c.b16 %v530, %v529
    %v543 = vpack.c.b16 %v532, %v531
    %v544 = vpack.c.b16 %v534, %v533
    %v545 = vpack.c.b16 %v536, %v535
    %v546 = vpack.c.b16 %v538, %v537
    %555 = vmatprep.subr.bf16.mxu0 0
    %556 = vmatpush1.bf16.msra.mxu0 %v539
    %557 = vmatprep.subr.bf16.mxu0 0
    %558 = vmatpush1.bf16.msra.mxu0 %v540
    %559 = vmatprep.subr.bf16.mxu0 0
    %560 = vmatpush1.bf16.msra.mxu0 %v541
    %561 = vmatprep.subr.bf16.mxu0 0
    %562 = vmatpush1.bf16.msra.mxu0 %v542
    %563 = vmatprep.subr.bf16.mxu0 0
    %564 = vmatpush1.bf16.msra.mxu0 %v543
    %565 = vmatprep.subr.bf16.mxu0 0
    %566 = vmatpush1.bf16.msra.mxu0 %v544
    %567 = vmatprep.subr.bf16.mxu0 0
    %568 = vmatpush1.bf16.msra.mxu0 %v545
    %569 = vmatprep.subr.bf16.mxu0 0
    %570 = vmatpush1.bf16.msra.mxu0 %v546
    %571 = vmatprep.subr.bf16.mxu0 0
    %572 = vmatpush1.bf16.msra.mxu0 0
    %573 = vmatprep.subr.bf16.mxu0 0
    %574 = vmatpush1.bf16.msra.mxu0 0
    %575 = vmatprep.subr.bf16.mxu0 0
    %576 = vmatpush1.bf16.msra.mxu0 0
    %577 = vmatprep.subr.bf16.mxu0 0
    %578 = vmatpush1.bf16.msra.mxu0 0
    %579 = vmatprep.subr.bf16.mxu0 0
    %580 = vmatpush1.bf16.msra.mxu0 0
    %581 = vmatprep.subr.bf16.mxu0 0
    %582 = vmatpush1.bf16.msra.mxu0 0
    %583 = vmatprep.subr.bf16.mxu0 0
    %584 = vmatpush1.bf16.msra.mxu0 0
    %585 = vmatprep.subr.bf16.mxu0 0
    %586 = vmatpush1.bf16.msra.mxu0 0
    %587 = vmatprep.mubr.bf16.mxu0 0
    %588 = vmatmul.mubr.bf16.gmra.mrb[0].mxu0 %v483
    %v589 = vpop.f32.mrb[0].mxu0
    %v590 = vadd.f32 %v505, %v589
    %v591 = vpop.f32.mrb[0].mxu0
    %v592 = vpop.f32.mrb[0].mxu0
    %v593 = vpop.f32.mrb[0].mxu0
    %594 = vdwg.mxu0
    %v595 = vmax.f32 %v590, 0.0
    %v596 = vld [vmem:[%s9] sm:$0x1]
    %v598 = vlaneseq
    %v599 = vshrl.u32 %v598, 7
    %v600 = vsub.s32 0, %v599
    %v601 = vrot.slane %v596, %v600
    %v603 = vmul.f32 %v595, %v601
    %604 = vadd.xlane.f32.xlu0 %v603
    %v605 = vpop.xlane.xlu0 %604
    %v606 = vld [vmem:[#allocation2] sm:$0x1]
    %v608 = vlaneseq
    %v609 = vshrl.u32 %v608, 7
    %v610 = vsub.s32 0, %v609
    %v611 = vrot.slane %v606, %v610
    %v613 = vadd.f32 %v605, %v611
    %v614 = vxor.u32 %v613, 2147483648
    %v615 = vmul.f32 %v614, 1.442695
    %v616 = vpow.pop %v615
    %v617 = vadd.f32 %v616, 1.0
    %v618 = vrcp.pop %v617
    %v619 = vmul.f32 1.0, %v618
    %vm620 = vcmask 7168
    %621 = vst.msk [vmem:[%s11] sm:$0xff] %vm620, %v619
    // Predicated region
    $region66: #{tpu_custom_call.1} parent=1 // pred_check
      _
    $region67: #{tpu_custom_call.1} parent=1 // pred_check_branch
      %623 = sbr.rel (0) target = $region69
    $region68: #{tpu_custom_call.1} parent=1 // pred_region
      _
    $region69: #{tpu_custom_call.1} parent=1 // pred_fallthru
      _
    // Predicated region
    $region70: #{tpu_custom_call.1} parent=1 // pred_check
      _
    $region71: #{tpu_custom_call.1} parent=1 // pred_check_branch
      %625 = sbr.rel (0) target = $region73
    $region72: #{tpu_custom_call.1} parent=1 // pred_region
      _
    $region73: #{tpu_custom_call.1} parent=1 // pred_fallthru
      _
    %626 = vsyncpa [#allocation4], 1
    %627 = vsyncpa [#allocation6], 1
    %628 = vsyncpa [#allocation9], 1

</llo_original>
